<compile_context>
chip_gen: v5e
topology: v5e:2x2
jax: 0.10.0
libtpu: 0.0.40
codegen_flags: <defaults>
</compile_context>

<pallas_src>
import functools

import jax
import jax.numpy as jnp
from jax.experimental import pallas as pl
from jax.experimental.pallas import tpu as pltpu

LN_EPS = 1e-5
_MIB = 1024 * 1024
_TARGET_BLOCK_BYTES = 2 * _MIB          # aim for ~2 MiB activation blocks per grid step


def _round_up(x, m):
    return ((x + m - 1) // m) * m


def _tpu_vmem_info():
    """(physical VMEM bytes per core, whether the query succeeded)."""
    try:
        return int(pltpu.get_tpu_info().vmem_capacity_bytes), True
    except Exception:
        # Conservative fallback sized for the smallest generation (v7x: 64 MiB/TC).
        return 64 * _MIB, False


# ----------------------------------------------------------------------------
# Kernel: one (tm, Dp) row tile per grid step.  alpha/beta are (1, Dp) resident.
# ----------------------------------------------------------------------------
def layernorm_kernel(x_ref, alpha_ref, beta_ref, o_ref, *, eps, d_true):
    x = x_ref[...].astype(jnp.float32)                   # (tm, Dp)

    # One-pass statistics: a single sweep yields both sums, so `centered`
    # never has to stay live across a second reduction.  Padded lanes (if
    # d_model was padded up to a lane multiple) are zero, so they do not
    # perturb s1/s2; we divide by the true d_model.
    s1 = jnp.sum(x, axis=-1, keepdims=True)              # (tm, 1)
    s2 = jnp.sum(x * x, axis=-1, keepdims=True)          # (tm, 1)
    mean = s1 * (1.0 / d_true)
    # torch.Tensor.std default is unbiased -> divide by (D - 1).
    var = (s2 - s1 * mean) * (1.0 / max(d_true - 1, 1))
    var = jnp.maximum(var, 0.0)                          # guard one-pass rounding
    std = jnp.sqrt(var)

    # eps added to std (per module spec); reciprocal on the EUP slot plus one
    # Newton step to restore full f32 precision (touches only a (tm,1) column).
    s_eps = std + eps
    r = pl.reciprocal(s_eps, approx=True)
    inv = r * (2.0 - s_eps * r)

    alpha = alpha_ref[...].astype(jnp.float32)           # (1, Dp) broadcast
    beta = beta_ref[...].astype(jnp.float32)             # (1, Dp) broadcast
    o_ref[...] = ((x - mean) * inv * alpha + beta).astype(o_ref.dtype)


# ----------------------------------------------------------------------------
# Tile selection: size by bytes, cap by VMEM, dtype-aware sublane rounding.
# ----------------------------------------------------------------------------
def _pick_tile_rows(n_rows, d_pad, itemsize, vmem_budget):
    # Dtype-specific sublane multiple: f32 packs 8 rows/vreg, bf16 16, int8 32.
    sublane = {4: 8, 2: 16, 1: 32}.get(itemsize, 8)

    # Target ~2 MiB input block per grid step (step overhead ~0.35 us).
    row_in_bytes = d_pad * itemsize
    tm = max(sublane, (_TARGET_BLOCK_BYTES // row_in_bytes) // sublane * sublane)

    # VMEM cap: 2 double-buffered input blocks + 2 output blocks (activation
    # dtype) plus ~3 f32-sized intermediates per block.
    per_row_ws = (4 * itemsize + 3 * 4) * d_pad
    tm_cap = max(sublane, (vmem_budget // per_row_ws) // sublane * sublane)
    tm = min(tm, tm_cap)

    # Never larger than the (sublane-rounded) row count.
    tm = min(tm, _round_up(n_rows, sublane))

    # Give megacore (v7x) at least two grid steps whenever n allows it.
    if pl.cdiv(n_rows, tm) < 2 and n_rows > sublane:
        tm = _round_up(pl.cdiv(n_rows, 2), sublane)

    return tm


# ----------------------------------------------------------------------------
# Wrapper: flatten leading dims to rows, pad D to lane multiple, tile rows.
# ----------------------------------------------------------------------------
def layer_norm(x, alpha, beta, *, eps=LN_EPS):
    orig_shape = x.shape
    d = orig_shape[-1]
    x2d = x.reshape(-1, d)
    n = x2d.shape[0]
    itemsize = x.dtype.itemsize

    # Lane-dense feature dim: pad d_model to a multiple of 128 so output
    # stores are unmasked `vst` instead of masked narrow stores.  Zero-padding
    # is exact (sums unaffected, true-D divisor, padded lanes sliced off).
    # No-op when d_model is already a multiple of 128.
    d_pad = _round_up(d, 128)
    if d_pad != d:
        x2d = jnp.pad(x2d, ((0, 0), (0, d_pad - d)))
    alpha2d = jnp.pad(alpha.reshape(1, d), ((0, 0), (0, d_pad - d)))
    beta2d = jnp.pad(beta.reshape(1, d), ((0, 0), (0, d_pad - d)))

    # Per-generation VMEM budget: ~48 MiB on v7x (leave headroom under the
    # 64 MiB physical), ~96 MiB on v5e/v6e (128 MiB physical).
    phys_vmem, vmem_known = _tpu_vmem_info()
    vmem_budget = min(int(phys_vmem * 3 // 4), 100 * _MIB)

    tm = _pick_tile_rows(n, d_pad, itemsize, vmem_budget)
    grid = (pl.cdiv(n, tm),)

    # On v7x-like chips (small VMEM, very fast HBM) tiny blocks can expose DMA
    # issue latency; a third input buffer hides it.  Keep the default depth of
    # 2 elsewhere and for large blocks.
    block_bytes = tm * d_pad * itemsize
    is_v7x_like = vmem_known and phys_vmem <= 64 * _MIB
    if is_v7x_like and block_bytes < 1 * _MIB:
        x_spec = pl.BlockSpec((tm, d_pad), lambda i: (i, 0),
                              pipeline_mode=pl.Buffered(3))
    else:
        x_spec = pl.BlockSpec((tm, d_pad), lambda i: (i, 0))

    out2d = pl.pallas_call(
        functools.partial(layernorm_kernel, eps=eps, d_true=d),
        out_shape=jax.ShapeDtypeStruct((n, d_pad), x.dtype),
        grid=grid,
        in_specs=[
            x_spec,                                       # activations: row-tiled
            pl.BlockSpec((1, d_pad), lambda i: (0, 0)),   # alpha: resident in VMEM
            pl.BlockSpec((1, d_pad), lambda i: (0, 0)),   # beta:  resident in VMEM
        ],
        out_specs=pl.BlockSpec((tm, d_pad), lambda i: (i, 0)),
        compiler_params=pltpu.CompilerParams(
            dimension_semantics=("parallel",),            # shard row tiles across v7x TCs
            vmem_limit_bytes=vmem_budget,
        ),
    )(x2d, alpha2d, beta2d)

    if d_pad != d:
        out2d = out2d[:, :d]
    return out2d.reshape(orig_shape)


# ----------------------------------------------------------------------------
# Pure-JAX reference (mirrors the PyTorch math exactly) for a sanity check
# ----------------------------------------------------------------------------
def _layer_norm_ref(x, alpha, beta, eps=LN_EPS):
    d = x.shape[-1]
    mean = jnp.mean(x, axis=-1, keepdims=True)
    centered = x - mean
    var = jnp.sum(centered * centered, axis=-1, keepdims=True) / max(d - 1, 1)
    std = jnp.sqrt(var)
    return alpha * centered / (std + eps) + beta


if __name__ == "__main__":
    key = jax.random.PRNGKey(0)
    kx, ka, kb = jax.random.split(key, 3)

    B, S, D_MODEL = 2, 8, 32

    x = jax.random.normal(kx, (B, S, D_MODEL), jnp.float32)
    # Parameters: alpha init ones, beta init zeros (as in the module); perturb
    # slightly so the affine path is actually exercised.
    alpha = jnp.ones((D_MODEL,), jnp.float32) + 0.1 * jax.random.normal(ka, (D_MODEL,), jnp.float32)
    beta = jnp.zeros((D_MODEL,), jnp.float32) + 0.1 * jax.random.normal(kb, (D_MODEL,), jnp.float32)

    out = layer_norm(x, alpha, beta)
    out = jax.block_until_ready(out)

    ref = _layer_norm_ref(x, alpha, beta)
    assert out.shape == x.shape
    assert jnp.allclose(out, ref, atol=1e-4, rtol=1e-4), "kernel/reference mismatch"

    print("KERNEL_OK")
</pallas_src>

<mosaic_0001>
module attributes {stable_mosaic.version = 11 : i64} {
  func.func @layernorm_kernel(%arg0: i32, %arg1: memref<8x128xf32, #tpu.memory_space<vmem>>, %arg2: memref<1x128xf32, #tpu.memory_space<vmem>>, %arg3: memref<1x128xf32, #tpu.memory_space<vmem>>, %arg4: memref<8x128xf32, #tpu.memory_space<vmem>>) attributes {dimension_semantics = [#tpu.dimension_semantics<parallel>], iteration_bounds = array<i64: 2>, scalar_prefetch = 0 : i64, scratch_operands = 0 : i64, tpu.core_type = #tpu.core_type<tc>, window_params = [{transform_indices = @transform_0, window_bounds = array<i64: 8, 128>}, {pipeline_mode = #tpu.pipeline_mode<synchronous>, transform_indices = @transform_1, window_bounds = array<i64: 1, 128>}, {pipeline_mode = #tpu.pipeline_mode<synchronous>, transform_indices = @transform_2, window_bounds = array<i64: 1, 128>}, {transform_indices = @transform_3, window_bounds = array<i64: 8, 128>}]} {
    %c0 = arith.constant 0 : index
    %c0_0 = arith.constant 0 : index
    %0 = vector.load %arg1[%c0, %c0_0] : memref<8x128xf32, #tpu.memory_space<vmem>>, vector<8x128xf32>
    %cst = arith.constant dense<0.000000e+00> : vector<8xf32>
    %1 = vector.multi_reduction <add>, %0, %cst [1] : vector<8x128xf32> to vector<8xf32>
    %2 = vector.shape_cast %1 : vector<8xf32> to vector<8x1xf32>
    %3 = arith.mulf %0, %0 : vector<8x128xf32>
    %cst_1 = arith.constant dense<0.000000e+00> : vector<8xf32>
    %4 = vector.multi_reduction <add>, %3, %cst_1 [1] : vector<8x128xf32> to vector<8xf32>
    %5 = vector.shape_cast %4 : vector<8xf32> to vector<8x1xf32>
    %cst_2 = arith.constant 3.125000e-02 : f32
    %6 = vector.broadcast %cst_2 : f32 to vector<8x1xf32>
    %7 = arith.mulf %2, %6 : vector<8x1xf32>
    %8 = arith.mulf %2, %7 : vector<8x1xf32>
    %9 = arith.subf %5, %8 : vector<8x1xf32>
    %cst_3 = arith.constant 0.0322580636 : f32
    %10 = vector.broadcast %cst_3 : f32 to vector<8x1xf32>
    %11 = arith.mulf %9, %10 : vector<8x1xf32>
    %cst_4 = arith.constant 0.000000e+00 : f32
    %12 = vector.broadcast %cst_4 : f32 to vector<8x1xf32>
    %13 = arith.maximumf %11, %12 : vector<8x1xf32>
    %14 = math.sqrt %13 : vector<8x1xf32>
    %cst_5 = arith.constant 9.99999974E-6 : f32
    %15 = vector.broadcast %cst_5 : f32 to vector<8x1xf32>
    %16 = arith.addf %14, %15 : vector<8x1xf32>
    %17 = tpu.reciprocal %16 {approx = true} : vector<8x1xf32> -> vector<8x1xf32>
    %18 = arith.mulf %16, %17 : vector<8x1xf32>
    %cst_6 = arith.constant 2.000000e+00 : f32
    %19 = vector.broadcast %cst_6 : f32 to vector<8x1xf32>
    %20 = arith.subf %19, %18 : vector<8x1xf32>
    %21 = arith.mulf %17, %20 : vector<8x1xf32>
    %c0_7 = arith.constant 0 : index
    %c0_8 = arith.constant 0 : index
    %22 = vector.load %arg2[%c0_7, %c0_8] : memref<1x128xf32, #tpu.memory_space<vmem>>, vector<1x128xf32>
    %c0_9 = arith.constant 0 : index
    %c0_10 = arith.constant 0 : index
    %23 = vector.load %arg3[%c0_9, %c0_10] : memref<1x128xf32, #tpu.memory_space<vmem>>, vector<1x128xf32>
    %24 = vector.broadcast %7 : vector<8x1xf32> to vector<8x128xf32>
    %25 = arith.subf %0, %24 : vector<8x128xf32>
    %26 = vector.broadcast %21 : vector<8x1xf32> to vector<8x128xf32>
    %27 = arith.mulf %25, %26 : vector<8x128xf32>
    %28 = vector.broadcast %22 : vector<1x128xf32> to vector<8x128xf32>
    %29 = arith.mulf %27, %28 : vector<8x128xf32>
    %30 = vector.broadcast %23 : vector<1x128xf32> to vector<8x128xf32>
    %31 = arith.addf %29, %30 : vector<8x128xf32>
    %c0_11 = arith.constant 0 : index
    %c0_12 = arith.constant 0 : index
    %32 = vector.load %arg4[%c0_11, %c0_12] : memref<8x128xf32, #tpu.memory_space<vmem>>, vector<8x128xf32>
    tpu.vector_store %arg4[%c0_11, %c0_12], %31 {strides = array<i32>} : memref<8x128xf32, #tpu.memory_space<vmem>>, vector<8x128xf32>,
    return
  }
  func.func @transform_0(%arg0: i32) -> (i32, i32) {
    %c0_i32 = arith.constant 0 : i32
    %c0_i32_0 = arith.constant 0 : i32
    return %arg0, %c0_i32 : i32, i32
  }
  func.func @transform_1(%arg0: i32) -> (i32, i32) {
    %c0_i32 = arith.constant 0 : i32
    %c0_i32_0 = arith.constant 0 : i32
    %c0_i32_1 = arith.constant 0 : i32
    return %c0_i32, %c0_i32_0 : i32, i32
  }
  func.func @transform_2(%arg0: i32) -> (i32, i32) {
    %c0_i32 = arith.constant 0 : i32
    %c0_i32_0 = arith.constant 0 : i32
    %c0_i32_1 = arith.constant 0 : i32
    return %c0_i32, %c0_i32_0 : i32, i32
  }
  func.func @transform_3(%arg0: i32) -> (i32, i32) {
    %c0_i32 = arith.constant 0 : i32
    %c0_i32_0 = arith.constant 0 : i32
    return %arg0, %c0_i32 : i32, i32
  }
}

</mosaic_0001>

<llo_original>
// kernel: tpu_custom_call.1
$region0: #{tpu_custom_call.1}
  #allocation0 [shape = 'u32[]', space=smem, size = 0x4, offset = 0x4, fixed_abs, tag = 'smem constant byte address 0x4 - core index']
  #allocation1 [shape = 'u32[72,128]{1,0:T(1,128)}', space=vmem, size = 0x9000, scoped, tag = 'internal scratch']
  %s0 = inlined_call_operand.hbm [shape: f32[16,128], index: 0, kind: input, shape index: {}]
  %s1 = inlined_call_operand.hbm [shape: f32[1,128], index: 1, kind: input, shape index: {}]
  %s2 = inlined_call_operand.vmem [shape: f32[1,128], index: 2, kind: input, shape index: {}]
  %s3 = inlined_call_operand.hbm [shape: f32[16,128], index: 3, kind: output, shape index: {}]
  %s4 = sld [smem:[#allocation0]]
  $region53: #{tpu_custom_call.1} parent=0
    _
  %s6 = ssub.s32 1, %s4
  %s7 = scalar_select 0, %s6, %s4
  $region1: #{tpu_custom_call.1} parent=0
    #allocation2 [shape = 'u8[8192]{0}', space=vmem, size = 0x2000, scoped, tag = 'input window, operand 0']
    #allocation3 [shape = 's32[2]{0}', space=sflag, size = 0x8, scoped, tag = 'scoped memory for tpu_custom_call.1']
    #allocation4 [shape = 's32[2]{0}', space=sflag, size = 0x8, scoped, tag = 'scoped memory for tpu_custom_call.1']
    #allocation5 [shape = 'u8[512]{0}', space=vmem, size = 0x400, scoped, tag = 'input window, operand 1, single buffered']
    #allocation6 [shape = 's32[1]{0}', space=sflag, size = 0x4, scoped, tag = 'scoped memory for tpu_custom_call.1']
    #allocation7 [shape = 'u8[8192]{0}', space=vmem, size = 0x2000, scoped, tag = 'output window, operand 0']
    %8 = vsyncpa [#allocation3], 0
    %s9 = scalar_lea.sflag [#allocation3], 1
    %10 = vsyncpa %s9, 0
    %11 = vsyncpa [#allocation6], 0
    %12 = vsyncpa [#allocation4], 0
    %s13 = scalar_lea.sflag [#allocation4], 1
    %14 = vsyncpa %s13, 0
    loop: start=0, step=1, limit=4
    $region2: #{tpu_custom_call.1} parent=1 // loop_pre_header
      _
    $region3: #{tpu_custom_call.1} parent=1 // loop_header
      %s16 = sphi 0, %s20
      %p17 = scmp.ge.s32.totalorder %s16, 4
      %s26 = sphi 0, %s28
      %s29 = sphi 0, %s26
      %s30 = sphi 0, %s29
      %s46 = sphi 0, %s30
      %s50 = sphi 0, %s50
      %s52 = sphi 0, %s50
      %s53 = sphi 0, %s52
      %s67 = sphi 0, %s53
      %s71 = sphi 0, %s71
      %s73 = sphi 0, %s71
      %s74 = sphi 0, %s73
      %s88 = sphi 0, %s74
      %s94 = sphi 0, %s96
      %s97 = sphi 0, %s94
      %s98 = sphi 0, %s97
      %s114 = sphi 0, %s98
    $region4: #{tpu_custom_call.1} parent=1 // loop_header_branch
      %19 = sbr.rel (%p17) target = $region8
    $region5: #{tpu_custom_call.1} parent=1 // loop_body
      %s21 = ssub.s32 %s16, 1
      %s22 = ssub.s32 %s16, 2
      %s23 = sadd.s32 %s16, 1
      %s24 = ssub.s32 %s16, %s23
      %p25 = scmp.eq.s32.totalorder %s24, 0
      %s27 = sadd.s32 %s26, 1
      %s28 = scalar_select %p25, %s26, %s27
      %p31 = pneg %p25
      %p32 = scmp.eq.s32.totalorder %s16, 1
      %p33 = por %p31, %p32
      %p34 = scmp.ne.s32.totalorder %s26, %s29
      %p35 = scmp.eq.s32.totalorder %s16, 0
      %p36 = por %p34, %p35
      %p37 = scmp.ne.s32.totalorder %s26, %s29
      %p38 = scmp.eq.s32.totalorder %s21, 1
      %p39 = por %p37, %p38
      %p40 = scmp.ne.s32.totalorder %s29, %s30
      %p41 = scmp.eq.s32.totalorder %s21, 0
      %p42 = por %p40, %p41
      %p43 = scmp.ne.s32.totalorder %s29, %s30
      %p44 = scmp.eq.s32.totalorder %s22, 1
      %p45 = por %p43, %p44
      %p47 = scmp.ne.s32.totalorder %s30, %s46
      %p48 = scmp.eq.s32.totalorder %s22, 0
      %p49 = por %p47, %p48
      %s51 = sadd.s32 %s50, 1
      %p54 = scmp.eq.s32.totalorder %s16, 1
      %p55 = scmp.ne.s32.totalorder %s50, %s52
      %p56 = scmp.eq.s32.totalorder %s16, 0
      %p57 = por %p55, %p56
      %p58 = scmp.ne.s32.totalorder %s50, %s52
      %p59 = scmp.eq.s32.totalorder %s21, 1
      %p60 = por %p58, %p59
      %p61 = scmp.ne.s32.totalorder %s52, %s53
      %p62 = scmp.eq.s32.totalorder %s21, 0
      %p63 = por %p61, %p62
      %p64 = scmp.ne.s32.totalorder %s52, %s53
      %p65 = scmp.eq.s32.totalorder %s22, 1
      %p66 = por %p64, %p65
      %p68 = scmp.ne.s32.totalorder %s53, %s67
      %p69 = scmp.eq.s32.totalorder %s22, 0
      %p70 = por %p68, %p69
      %s72 = sadd.s32 %s71, 1
      %p75 = scmp.eq.s32.totalorder %s16, 1
      %p76 = scmp.ne.s32.totalorder %s71, %s73
      %p77 = scmp.eq.s32.totalorder %s16, 0
      %p78 = por %p76, %p77
      %p79 = scmp.ne.s32.totalorder %s71, %s73
      %p80 = scmp.eq.s32.totalorder %s21, 1
      %p81 = por %p79, %p80
      %p82 = scmp.ne.s32.totalorder %s73, %s74
      %p83 = scmp.eq.s32.totalorder %s21, 0
      %p84 = por %p82, %p83
      %p85 = scmp.ne.s32.totalorder %s73, %s74
      %p86 = scmp.eq.s32.totalorder %s22, 1
      %p87 = por %p85, %p86
      %p89 = scmp.ne.s32.totalorder %s74, %s88
      %p90 = scmp.eq.s32.totalorder %s22, 0
      %p91 = por %p89, %p90
      %s92 = ssub.s32 %s16, %s23
      %p93 = scmp.eq.s32.totalorder %s92, 0
      %s95 = sadd.s32 %s94, 1
      %s96 = scalar_select %p93, %s94, %s95
      %p99 = pneg %p93
      %p100 = scmp.eq.s32.totalorder %s16, 1
      %p101 = por %p99, %p100
      %p102 = scmp.ne.s32.totalorder %s94, %s97
      %p103 = scmp.eq.s32.totalorder %s16, 0
      %p104 = por %p102, %p103
      %p105 = scmp.ne.s32.totalorder %s94, %s97
      %p106 = scmp.eq.s32.totalorder %s21, 1
      %p107 = por %p105, %p106
      %p108 = scmp.ne.s32.totalorder %s97, %s98
      %p109 = scmp.eq.s32.totalorder %s21, 0
      %p110 = por %p108, %p109
      %p111 = scmp.ne.s32.totalorder %s97, %s98
      %p112 = scmp.eq.s32.totalorder %s22, 1
      %p113 = por %p111, %p112
      %p115 = scmp.ne.s32.totalorder %s98, %s114
      %p116 = scmp.eq.s32.totalorder %s22, 0
      %p117 = por %p115, %p116
      %p118 = scmp.le.s32.totalorder 1, %s16
      %p119 = scmp.lt.s32.totalorder %s16, 3
      %p120 = pnand %p118, %p119
      %p121 = pneg %p120
      // Predicated region
      $region9: #{tpu_custom_call.1} parent=5 // pred_check
        _
      $region10: #{tpu_custom_call.1} parent=5 // pred_check_branch
        %123 = sbr.rel (%p120) target = $region12
      $region11: #{tpu_custom_call.1} parent=5 // pred_region
        %s124 = ssub.s32 %s16, 1
        // Predicated region
        $region13: #{tpu_custom_call.1} parent=11 // pred_check
          %p125 = pneg %p63
        $region14: #{tpu_custom_call.1} parent=11 // pred_check_branch
          %127 = sbr.rel (%p125) target = $region16
        $region15: #{tpu_custom_call.1} parent=11 // pred_region
          %129 = vsyncadd [#allocation6], 0
          %s131 = sshll.u32 %s1, 4
          %s132 = int_to_ptr.hbm [resolvable:$true] %s131
          %s133 = sshll.u32 [#allocation5], 4
          %s134 = int_to_ptr.vmem [resolvable:$true] %s133
          %136 = dma.hbm_to_vmem [thread:$0]  %s132, 16, %s134, [#allocation6]
        $region16: #{tpu_custom_call.1} parent=11 // pred_fallthru
          _
        // Predicated region
        $region17: #{tpu_custom_call.1} parent=11 // pred_check
          %p137 = pneg %p84
        $region18: #{tpu_custom_call.1} parent=11 // pred_check_branch
          %139 = sbr.rel (%p137) target = $region20
        $region19: #{tpu_custom_call.1} parent=11 // pred_region
          _
        $region20: #{tpu_custom_call.1} parent=11 // pred_fallthru
          _
      $region12: #{tpu_custom_call.1} parent=5 // pred_fallthru
        _
      %p140 = scmp.lt.s32.totalorder %s16, 2
      // Predicated region
      $region21: #{tpu_custom_call.1} parent=5 // pred_check
        %p141 = pneg %p140
      $region22: #{tpu_custom_call.1} parent=5 // pred_check_branch
        %143 = sbr.rel (%p141) target = $region24
      $region23: #{tpu_custom_call.1} parent=5 // pred_region
        // Predicated region
        $region25: #{tpu_custom_call.1} parent=23 // pred_check
          %p144 = pneg %p36
        $region26: #{tpu_custom_call.1} parent=23 // pred_check_branch
          %146 = sbr.rel (%p144) target = $region28
        $region27: #{tpu_custom_call.1} parent=23 // pred_region
          %s147 = sand.u32 %s26, 1
          %s148 = scalar_lea.sflag [#allocation3], %s147
          %s149 = sand.u32 %s26, 1
          %s150 = smul.addr %s149, 8
          %s151 = scalar_lea.vmem [#allocation2], %s150
          %153 = vsyncadd %s148, 0
          %s154 = smul.addr %s16, 8
          %s155 = scalar_lea.hbm %s0, %s154
          %s157 = sshll.u32 %s155, 4
          %s158 = int_to_ptr.hbm [resolvable:$true] %s157
          %s159 = sshll.u32 %s151, 4
          %s160 = int_to_ptr.vmem [resolvable:$true] %s159
          %162 = dma.hbm_to_vmem [thread:$0]  %s158, 128, %s160, %s148
        $region28: #{tpu_custom_call.1} parent=23 // pred_fallthru
          _
      $region24: #{tpu_custom_call.1} parent=5 // pred_fallthru
        _
      %p163 = scmp.le.s32.totalorder 1, %s16
      %p164 = scmp.lt.s32.totalorder %s16, 3
      %p165 = pnand %p163, %p164
      %p166 = pneg %p165
      // Predicated region
      $region29: #{tpu_custom_call.1} parent=5 // pred_check
        _
      $region30: #{tpu_custom_call.1} parent=5 // pred_check_branch
        %168 = sbr.rel (%p165) target = $region32
      $region31: #{tpu_custom_call.1} parent=5 // pred_region
        %s169 = ssub.s32 %s16, 1
        %s170 = sand.u32 %s29, 1
        %s171 = scalar_lea.sflag [#allocation3], %s170
        %s172 = sand.u32 %s29, 1
        %s173 = smul.addr %s172, 8
        %s174 = scalar_lea.vmem [#allocation2], %s173
        // Predicated region
        $region33: #{tpu_custom_call.1} parent=31 // pred_check
          %p175 = pneg %p42
        $region34: #{tpu_custom_call.1} parent=31 // pred_check_branch
          %177 = sbr.rel (%p175) target = $region36
        $region35: #{tpu_custom_call.1} parent=31 // pred_region
          %179 = dma.done %s171, 128
        $region36: #{tpu_custom_call.1} parent=31 // pred_fallthru
          _
        // Predicated region
        $region37: #{tpu_custom_call.1} parent=31 // pred_check
          %p180 = pneg %p63
        $region38: #{tpu_custom_call.1} parent=31 // pred_check_branch
          %182 = sbr.rel (%p180) target = $region40
        $region39: #{tpu_custom_call.1} parent=31 // pred_region
          %184 = dma.done [#allocation6], 16
        $region40: #{tpu_custom_call.1} parent=31 // pred_fallthru
          _
        %s185 = sand.u32 %s29, 1
        %s186 = scalar_lea.sflag [#allocation3], %s185
        %s187 = sand.u32 %s29, 1
        %s188 = smul.addr %s187, 8
        %s189 = scalar_lea.vmem [#allocation2], %s188
        %p190 = pneg %p42
        %p191 = pneg %p39
        %p192 = pneg %p63
        %p193 = pneg %p60
        %p194 = pneg %p84
        %p195 = pneg %p81
        %p196 = pneg %p110
        %p197 = pneg %p107
        %s198 = sand.u32 %s97, 1
        %s199 = scalar_lea.sflag [#allocation4], %s198
        %s200 = sand.u32 %s97, 1
        %s201 = smul.addr %s200, 8
        %s202 = scalar_lea.vmem [#allocation7], %s201
        %v203 = vld [vmem:[%s174] sm:$0xff]
        %204 = vadd.xlane.f32.xlu0 %v203
        %v205 = vpop.xlane.xlu0 %204
        %v206 = vmul.f32 %v203, %v203
        %207 = vadd.xlane.f32.xlu0 %v206
        %v208 = vpop.xlane.xlu0 %207
        %v209 = vmul.f32 %v205, 0.03125
        %v210 = vmul.f32 %v205, %v209
        %v211 = vsub.f32 %v208, %v210
        %v212 = vmul.f32 %v211, 0.032258064
        %v213 = vmax.f32 %v212, 0.0
        %v214 = vrsqrt.pop %v213
        %v215 = vmul.f32 %v214, %v213
        %v216 = vmul.f32 %v215, %v214
        %v217 = vmul.f32 0.5, %v216
        %v218 = vsub.f32 1.5, %v217
        %v219 = vmul.f32 %v214, %v218
        %v220 = vmul.f32 %v213, %v219
        %vm221 = vcmp.eq.f32.partialorder %v213, inf
        %v222 = vsel %vm221, %v213, %v220
        %vm223 = vcmp.eq.f32.partialorder %v213, 0.0
        %v224 = vand.u32 %v213, 2147483648
        %v225 = vsel %vm223, %v224, %v222
        %v226 = vadd.f32 %v225, 1e-05
        %v227 = vrcp.pop %v226
        %v228 = vmul.f32 %v226, %v227
        %v229 = vsub.f32 2.0, %v228
        %v230 = vmul.f32 %v227, %v229
        %v231 = vld [vmem:[#allocation5] sm:$0x1]
        %v232 = vld [vmem:[%s2] sm:$0x1]
        %v233 = vsub.f32 %v203, %v209
        %v234 = vmul.f32 %v233, %v230
        %v236 = vperm.slane %v231, 0
        %v238 = vmul.f32 %v234, %v236
        %v240 = vperm.slane %v232, 0
        %v242 = vadd.f32 %v238, %v240
        %243 = vst [vmem:[%s202] sm:$0xff] %v242
        %s244 = sand.u32 %s97, 1
        %s245 = scalar_lea.sflag [#allocation4], %s244
        %s246 = sand.u32 %s97, 1
        %s247 = smul.addr %s246, 8
        %s248 = scalar_lea.vmem [#allocation7], %s247
        // Predicated region
        $region41: #{tpu_custom_call.1} parent=31 // pred_check
          %p249 = pneg %p107
        $region42: #{tpu_custom_call.1} parent=31 // pred_check_branch
          %251 = sbr.rel (%p249) target = $region44
        $region43: #{tpu_custom_call.1} parent=31 // pred_region
          %253 = vsyncadd %s245, 0
          %s254 = smul.addr %s21, 8
          %s255 = scalar_lea.hbm %s3, %s254
          %s257 = sshll.u32 %s248, 4
          %s258 = int_to_ptr.vmem [resolvable:$true] %s257
          %s259 = sshll.u32 %s255, 4
          %s260 = int_to_ptr.hbm [resolvable:$true] %s259
          %262 = dma.vmem_to_hbm [thread:$0]  %s258, 128, %s260, %s245
        $region44: #{tpu_custom_call.1} parent=31 // pred_fallthru
          _
      $region32: #{tpu_custom_call.1} parent=5 // pred_fallthru
        _
      %p263 = scmp.le.s32.totalorder 2, %s16
      // Predicated region
      $region45: #{tpu_custom_call.1} parent=5 // pred_check
        %p264 = pneg %p263
      $region46: #{tpu_custom_call.1} parent=5 // pred_check_branch
        %266 = sbr.rel (%p264) target = $region48
      $region47: #{tpu_custom_call.1} parent=5 // pred_region
        %s267 = ssub.s32 %s16, 2
        // Predicated region
        $region49: #{tpu_custom_call.1} parent=47 // pred_check
          %p268 = pneg %p113
        $region50: #{tpu_custom_call.1} parent=47 // pred_check_branch
          %270 = sbr.rel (%p268) target = $region52
        $region51: #{tpu_custom_call.1} parent=47 // pred_region
          %s271 = sand.u32 %s98, 1
          %s272 = scalar_lea.sflag [#allocation4], %s271
          %s273 = sand.u32 %s98, 1
          %s274 = smul.addr %s273, 8
          %s275 = scalar_lea.vmem [#allocation7], %s274
          %277 = dma.done %s272, 128
        $region52: #{tpu_custom_call.1} parent=47 // pred_fallthru
          _
      $region48: #{tpu_custom_call.1} parent=5 // pred_fallthru
        _
    $region6: #{tpu_custom_call.1} parent=1 // loop_footer
      %s20 = sadd.s32 1, %s16
    $region7: #{tpu_custom_call.1} parent=1 // loop_footer_branch
      %15 = sbr.rel target = $region3
    $region8: #{tpu_custom_call.1} parent=1 // loop_exit
      _
    %278 = vsyncpa [#allocation3], 1
    %s279 = scalar_lea.sflag [#allocation3], 1
    %280 = vsyncpa %s279, 1
    %281 = vsyncpa [#allocation6], 1
    %282 = vsyncpa [#allocation4], 1
    %s283 = scalar_lea.sflag [#allocation4], 1
    %284 = vsyncpa %s283, 1

</llo_original>
